<compile_context>
chip_gen: v6e
topology: v6e:2x2x1
jax: 0.10.0
libtpu: 0.0.40
codegen_flags: <defaults>
</compile_context>

<pallas_src>
import jax
import jax.numpy as jnp
from jax import lax
from jax.experimental import pallas as pl
from jax.experimental.pallas import tpu as pltpu

EPS = 1e-5


# ----------------------------------------------------------------------------
# Pallas kernel
# ----------------------------------------------------------------------------
def spblock_kernel(x_ref, ah_ref, aw_ref, rh_ref, rw_ref,
                   w1_ref, w2_ref, bsum_ref, w3_ref, b3_ref, o_ref):
    x = x_ref[0].astype(jnp.float32)                       # (C_in, H*W)

    # Strip pooling as lane-dense matmuls (mean over W / mean over H).
    p1 = jnp.dot(x, ah_ref[...], preferred_element_type=jnp.float32)   # (C_in, H)
    p2 = jnp.dot(x, aw_ref[...], preferred_element_type=jnp.float32)   # (C_in, W)

    def strip_conv(p, wf):
        # 3-tap "same" conv along the strip axis, zero padded, one matmul.
        c, L = p.shape
        zero = jnp.zeros((c, 1), jnp.float32)
        p_left = jnp.concatenate([zero, p[:, :L - 1]], axis=1)   # p[:, h-1]
        p_right = jnp.concatenate([p[:, 1:], zero], axis=1)      # p[:, h+1]
        taps = jnp.concatenate([p_left, p, p_right], axis=0)     # (3*C_in, L)
        return jnp.dot(wf, taps, preferred_element_type=jnp.float32)   # (mid, L)

    # BN scale already folded into w1/w2 in the wrapper.
    y1 = strip_conv(p1, w1_ref[...])                       # (mid, H)
    y2 = strip_conv(p2, w2_ref[...])                       # (mid, W)

    # Expand both strips to (mid, H*W), add fused BN shifts, ReLU.
    z = (jnp.dot(y1, rh_ref[...], preferred_element_type=jnp.float32)
         + jnp.dot(y2, rw_ref[...], preferred_element_type=jnp.float32)
         + bsum_ref[...])
    z = jnp.maximum(z, 0.0)                                # (mid, H*W)

    # 1x1 conv + bias + sigmoid, single wide store.
    o = jnp.dot(w3_ref[...], z, preferred_element_type=jnp.float32) + b3_ref[...]
    o_ref[0] = jax.nn.sigmoid(o).astype(o_ref.dtype)       # (C_out, H*W)


# ----------------------------------------------------------------------------
# Wrapper
# ----------------------------------------------------------------------------
def spblock_forward(x, params):
    N, C_in, H, W = x.shape
    HW = H * W
    C_out, mid = params["w3"].shape
    f32 = jnp.float32

    # ---- constants hoisted out of the kernel -------------------------------
    row_id = jnp.arange(HW, dtype=jnp.int32) // W          # h index of each flat pos
    col_id = jnp.arange(HW, dtype=jnp.int32) % W           # w index of each flat pos
    A_h = (row_id[:, None] == jnp.arange(H)[None, :]).astype(f32) / W   # (HW, H)
    A_w = (col_id[:, None] == jnp.arange(W)[None, :]).astype(f32) / H   # (HW, W)
    R_h = (jnp.arange(H)[:, None] == row_id[None, :]).astype(f32)       # (H, HW)
    R_w = (jnp.arange(W)[:, None] == col_id[None, :]).astype(f32)       # (W, HW)

    # ---- fold inference-mode BatchNorm into the strip-conv weights ---------
    def fold(w, gamma, beta, mean, var):
        scale = gamma / jnp.sqrt(var + EPS)                # (mid,)
        shift = beta - mean * scale                        # (mid,)
        # (mid, C_in, 3) -> (mid, 3, C_in) -> (mid, 3*C_in); column block k
        # matches tap k of the stacked [p_left; p; p_right] matrix.
        wf = jnp.moveaxis(w, 2, 1).reshape(mid, 3 * C_in) * scale[:, None]
        return wf.astype(f32), shift.reshape(mid, 1).astype(f32)

    w1f, t1 = fold(params["w1"], params["bn1_gamma"], params["bn1_beta"],
                   params["bn1_mean"], params["bn1_var"])
    w2f, t2 = fold(params["w2"], params["bn2_gamma"], params["bn2_beta"],
                   params["bn2_mean"], params["bn2_var"])
    bsum = t1 + t2                                          # (mid, 1)

    w3 = params["w3"].astype(f32)                           # (C_out, mid)
    b3 = params["b3"].reshape(C_out, 1).astype(f32)

    x2d = x.reshape(N, C_in, HW)                            # lane-dense input

    out2d = pl.pallas_call(
        spblock_kernel,
        out_shape=jax.ShapeDtypeStruct((N, C_out, HW), jnp.float32),
        grid=(N,),
        in_specs=[
            pl.BlockSpec((1, C_in, HW), lambda n: (n, 0, 0)),
            pl.BlockSpec((HW, H), lambda n: (0, 0)),
            pl.BlockSpec((HW, W), lambda n: (0, 0)),
            pl.BlockSpec((H, HW), lambda n: (0, 0)),
            pl.BlockSpec((W, HW), lambda n: (0, 0)),
            pl.BlockSpec((mid, 3 * C_in), lambda n: (0, 0)),
            pl.BlockSpec((mid, 3 * C_in), lambda n: (0, 0)),
            pl.BlockSpec((mid, 1), lambda n: (0, 0)),
            pl.BlockSpec((C_out, mid), lambda n: (0, 0)),
            pl.BlockSpec((C_out, 1), lambda n: (0, 0)),
        ],
        out_specs=pl.BlockSpec((1, C_out, HW), lambda n: (n, 0, 0)),
        compiler_params=pltpu.CompilerParams(
            dimension_semantics=("parallel",)),
    )(x2d, A_h, A_w, R_h, R_w, w1f, w2f, bsum, w3, b3)

    return out2d.reshape(N, C_out, H, W)


# ----------------------------------------------------------------------------
# Pure-JAX reference (mirrors the PyTorch forward, BN in inference mode)
# ----------------------------------------------------------------------------
def spblock_reference(x, params):
    N, C_in, H, W = x.shape
    dn = ("NCHW", "OIHW", "NCHW")

    def bn(y, gamma, beta, mean, var):
        g = gamma[None, :, None, None]
        b = beta[None, :, None, None]
        m = mean[None, :, None, None]
        v = var[None, :, None, None]
        return (y - m) / jnp.sqrt(v + EPS) * g + b

    x1 = jnp.mean(x, axis=3, keepdims=True)                         # (N,C,H,1)
    x1 = lax.conv_general_dilated(x1, params["w1"][:, :, :, None],
                                  (1, 1), ((1, 1), (0, 0)), dimension_numbers=dn)
    x1 = bn(x1, params["bn1_gamma"], params["bn1_beta"],
            params["bn1_mean"], params["bn1_var"])
    x1 = jnp.broadcast_to(x1, (N, x1.shape[1], H, W))

    x2 = jnp.mean(x, axis=2, keepdims=True)                         # (N,C,1,W)
    x2 = lax.conv_general_dilated(x2, params["w2"][:, :, None, :],
                                  (1, 1), ((0, 0), (1, 1)), dimension_numbers=dn)
    x2 = bn(x2, params["bn2_gamma"], params["bn2_beta"],
            params["bn2_mean"], params["bn2_var"])
    x2 = jnp.broadcast_to(x2, (N, x2.shape[1], H, W))

    z = jax.nn.relu(x1 + x2)
    out = lax.conv_general_dilated(z, params["w3"][:, :, None, None],
                                   (1, 1), ((0, 0), (0, 0)), dimension_numbers=dn)
    out = out + params["b3"][None, :, None, None]
    return jax.nn.sigmoid(out)


# ----------------------------------------------------------------------------
# Main
# ----------------------------------------------------------------------------
if __name__ == "__main__":
    N, C_in, H, W = 2, 4, 16, 16
    inplanes, outplanes = C_in, 4
    mid = outplanes

    key = jax.random.PRNGKey(0)
    keys = jax.random.split(key, 10)

    params = {
        # conv1: (mid, C_in, 3) taps along H ; conv2: (mid, C_in, 3) taps along W
        "w1": 0.2 * jax.random.normal(keys[0], (mid, inplanes, 3), jnp.float32),
        "w2": 0.2 * jax.random.normal(keys[1], (mid, inplanes, 3), jnp.float32),
        # conv3: 1x1 with bias
        "w3": 0.2 * jax.random.normal(keys[2], (outplanes, mid), jnp.float32),
        "b3": 0.1 * jax.random.normal(keys[3], (outplanes,), jnp.float32),
        # BatchNorm (inference mode) parameters
        "bn1_gamma": 1.0 + 0.1 * jax.random.normal(keys[4], (mid,), jnp.float32),
        "bn1_beta": 0.05 * jax.random.normal(keys[5], (mid,), jnp.float32),
        "bn1_mean": 0.1 * jax.random.normal(keys[6], (mid,), jnp.float32),
        "bn1_var": 0.5 + jax.random.uniform(keys[7], (mid,), jnp.float32),
        "bn2_gamma": 1.0 + 0.1 * jax.random.normal(keys[8], (mid,), jnp.float32),
        "bn2_beta": jnp.zeros((mid,), jnp.float32),
        "bn2_mean": jnp.zeros((mid,), jnp.float32),
        "bn2_var": jnp.ones((mid,), jnp.float32),
    }

    x = jax.random.normal(keys[9], (N, C_in, H, W), jnp.float32)

    out = spblock_forward(x, params)
    out = jax.block_until_ready(out)

    ref = spblock_reference(x, params)
    ref = jax.block_until_ready(ref)

    assert out.shape == (N, outplanes, H, W), out.shape
    assert jnp.allclose(out, ref, atol=1e-4, rtol=1e-4), \
        f"max abs err = {jnp.max(jnp.abs(out - ref))}"

    print("KERNEL_OK")
</pallas_src>

<mosaic_0001>
module attributes {stable_mosaic.version = 11 : i64} {
  func.func @spblock_kernel(%arg0: i32, %arg1: memref<1x4x256xf32, #tpu.memory_space<vmem>>, %arg2: memref<256x16xf32, #tpu.memory_space<vmem>>, %arg3: memref<256x16xf32, #tpu.memory_space<vmem>>, %arg4: memref<16x256xf32, #tpu.memory_space<vmem>>, %arg5: memref<16x256xf32, #tpu.memory_space<vmem>>, %arg6: memref<4x12xf32, #tpu.memory_space<vmem>>, %arg7: memref<4x12xf32, #tpu.memory_space<vmem>>, %arg8: memref<4x1xf32, #tpu.memory_space<vmem>>, %arg9: memref<4x4xf32, #tpu.memory_space<vmem>>, %arg10: memref<4x1xf32, #tpu.memory_space<vmem>>, %arg11: memref<1x4x256xf32, #tpu.memory_space<vmem>>) attributes {dimension_semantics = [#tpu.dimension_semantics<parallel>], iteration_bounds = array<i64: 2>, scalar_prefetch = 0 : i64, scratch_operands = 0 : i64, tpu.core_type = #tpu.core_type<tc>, window_params = [{transform_indices = @transform_0, window_bounds = array<i64: 1, 4, 256>}, {pipeline_mode = #tpu.pipeline_mode<synchronous>, transform_indices = @transform_1, window_bounds = array<i64: 256, 16>}, {pipeline_mode = #tpu.pipeline_mode<synchronous>, transform_indices = @transform_2, window_bounds = array<i64: 256, 16>}, {pipeline_mode = #tpu.pipeline_mode<synchronous>, transform_indices = @transform_3, window_bounds = array<i64: 16, 256>}, {pipeline_mode = #tpu.pipeline_mode<synchronous>, transform_indices = @transform_4, window_bounds = array<i64: 16, 256>}, {pipeline_mode = #tpu.pipeline_mode<synchronous>, transform_indices = @transform_5, window_bounds = array<i64: 4, 12>}, {pipeline_mode = #tpu.pipeline_mode<synchronous>, transform_indices = @transform_6, window_bounds = array<i64: 4, 12>}, {pipeline_mode = #tpu.pipeline_mode<synchronous>, transform_indices = @transform_7, window_bounds = array<i64: 4, 1>}, {pipeline_mode = #tpu.pipeline_mode<synchronous>, transform_indices = @transform_8, window_bounds = array<i64: 4, 4>}, {pipeline_mode = #tpu.pipeline_mode<synchronous>, transform_indices = @transform_9, window_bounds = array<i64: 4, 1>}, {transform_indices = @transform_10, window_bounds = array<i64: 1, 4, 256>}]} {
    %c0 = arith.constant 0 : index
    %c0_0 = arith.constant 0 : index
    %c0_1 = arith.constant 0 : index
    %0 = vector.load %arg1[%c0, %c0_0, %c0_1] : memref<1x4x256xf32, #tpu.memory_space<vmem>>, vector<1x4x256xf32>
    %1 = vector.shape_cast %0 : vector<1x4x256xf32> to vector<4x256xf32>
    %c0_2 = arith.constant 0 : index
    %c0_3 = arith.constant 0 : index
    %2 = vector.load %arg2[%c0_2, %c0_3] : memref<256x16xf32, #tpu.memory_space<vmem>>, vector<256x16xf32>
    %cst = arith.constant dense<0.000000e+00> : vector<4x16xf32>
    %3 = tpu.matmul %1, %2, %cst {dimension_numbers = #tpu.dot_dimension_numbers<[1], [0], [0], [1], [0, 0, 1, 1], [], []>} : vector<4x256xf32>, vector<256x16xf32>, vector<4x16xf32> -> vector<4x16xf32>
    %c0_4 = arith.constant 0 : index
    %c0_5 = arith.constant 0 : index
    %4 = vector.load %arg3[%c0_4, %c0_5] : memref<256x16xf32, #tpu.memory_space<vmem>>, vector<256x16xf32>
    %cst_6 = arith.constant dense<0.000000e+00> : vector<4x16xf32>
    %5 = tpu.matmul %1, %4, %cst_6 {dimension_numbers = #tpu.dot_dimension_numbers<[1], [0], [0], [1], [0, 0, 1, 1], [], []>} : vector<4x256xf32>, vector<256x16xf32>, vector<4x16xf32> -> vector<4x16xf32>
    %c0_7 = arith.constant 0 : index
    %c0_8 = arith.constant 0 : index
    %6 = vector.load %arg6[%c0_7, %c0_8] : memref<4x12xf32, #tpu.memory_space<vmem>>, vector<4x12xf32>
    %cst_9 = arith.constant 0.000000e+00 : f32
    %7 = vector.broadcast %cst_9 : f32 to vector<4x1xf32>
    %8 = vector.extract_strided_slice %3 {offsets = [0, 0], sizes = [4, 15], strides = [1, 1]} : vector<4x16xf32> to vector<4x15xf32>
    %9 = tpu.concatenate %7, %8 in 1 : vector<4x1xf32>, vector<4x15xf32> -> vector<4x16xf32>
    %10 = vector.extract_strided_slice %3 {offsets = [0, 1], sizes = [4, 15], strides = [1, 1]} : vector<4x16xf32> to vector<4x15xf32>
    %11 = tpu.concatenate %10, %7 in 1 : vector<4x15xf32>, vector<4x1xf32> -> vector<4x16xf32>
    %12 = tpu.concatenate %9, %3, %11 in 0 : vector<4x16xf32>, vector<4x16xf32>, vector<4x16xf32> -> vector<12x16xf32>
    %cst_10 = arith.constant dense<0.000000e+00> : vector<4x16xf32>
    %13 = tpu.matmul %6, %12, %cst_10 {dimension_numbers = #tpu.dot_dimension_numbers<[1], [0], [0], [1], [0, 0, 1, 1], [], []>} : vector<4x12xf32>, vector<12x16xf32>, vector<4x16xf32> -> vector<4x16xf32>
    %c0_11 = arith.constant 0 : index
    %c0_12 = arith.constant 0 : index
    %14 = vector.load %arg7[%c0_11, %c0_12] : memref<4x12xf32, #tpu.memory_space<vmem>>, vector<4x12xf32>
    %cst_13 = arith.constant 0.000000e+00 : f32
    %15 = vector.broadcast %cst_13 : f32 to vector<4x1xf32>
    %16 = vector.extract_strided_slice %5 {offsets = [0, 0], sizes = [4, 15], strides = [1, 1]} : vector<4x16xf32> to vector<4x15xf32>
    %17 = tpu.concatenate %15, %16 in 1 : vector<4x1xf32>, vector<4x15xf32> -> vector<4x16xf32>
    %18 = vector.extract_strided_slice %5 {offsets = [0, 1], sizes = [4, 15], strides = [1, 1]} : vector<4x16xf32> to vector<4x15xf32>
    %19 = tpu.concatenate %18, %15 in 1 : vector<4x15xf32>, vector<4x1xf32> -> vector<4x16xf32>
    %20 = tpu.concatenate %17, %5, %19 in 0 : vector<4x16xf32>, vector<4x16xf32>, vector<4x16xf32> -> vector<12x16xf32>
    %cst_14 = arith.constant dense<0.000000e+00> : vector<4x16xf32>
    %21 = tpu.matmul %14, %20, %cst_14 {dimension_numbers = #tpu.dot_dimension_numbers<[1], [0], [0], [1], [0, 0, 1, 1], [], []>} : vector<4x12xf32>, vector<12x16xf32>, vector<4x16xf32> -> vector<4x16xf32>
    %c0_15 = arith.constant 0 : index
    %c0_16 = arith.constant 0 : index
    %22 = vector.load %arg4[%c0_15, %c0_16] : memref<16x256xf32, #tpu.memory_space<vmem>>, vector<16x256xf32>
    %cst_17 = arith.constant dense<0.000000e+00> : vector<4x256xf32>
    %23 = tpu.matmul %13, %22, %cst_17 {dimension_numbers = #tpu.dot_dimension_numbers<[1], [0], [0], [1], [0, 0, 1, 1], [], []>} : vector<4x16xf32>, vector<16x256xf32>, vector<4x256xf32> -> vector<4x256xf32>
    %c0_18 = arith.constant 0 : index
    %c0_19 = arith.constant 0 : index
    %24 = vector.load %arg5[%c0_18, %c0_19] : memref<16x256xf32, #tpu.memory_space<vmem>>, vector<16x256xf32>
    %cst_20 = arith.constant dense<0.000000e+00> : vector<4x256xf32>
    %25 = tpu.matmul %21, %24, %cst_20 {dimension_numbers = #tpu.dot_dimension_numbers<[1], [0], [0], [1], [0, 0, 1, 1], [], []>} : vector<4x16xf32>, vector<16x256xf32>, vector<4x256xf32> -> vector<4x256xf32>
    %26 = arith.addf %23, %25 : vector<4x256xf32>
    %c0_21 = arith.constant 0 : index
    %c0_22 = arith.constant 0 : index
    %27 = vector.load %arg8[%c0_21, %c0_22] : memref<4x1xf32, #tpu.memory_space<vmem>>, vector<4x1xf32>
    %28 = vector.broadcast %27 : vector<4x1xf32> to vector<4x256xf32>
    %29 = arith.addf %26, %28 : vector<4x256xf32>
    %cst_23 = arith.constant 0.000000e+00 : f32
    %30 = vector.broadcast %cst_23 : f32 to vector<4x256xf32>
    %31 = arith.maximumf %29, %30 : vector<4x256xf32>
    %c0_24 = arith.constant 0 : index
    %c0_25 = arith.constant 0 : index
    %32 = vector.load %arg9[%c0_24, %c0_25] : memref<4x4xf32, #tpu.memory_space<vmem>>, vector<4x4xf32>
    %cst_26 = arith.constant dense<0.000000e+00> : vector<4x256xf32>
    %33 = tpu.matmul %32, %31, %cst_26 {dimension_numbers = #tpu.dot_dimension_numbers<[1], [0], [0], [1], [0, 0, 1, 1], [], []>} : vector<4x4xf32>, vector<4x256xf32>, vector<4x256xf32> -> vector<4x256xf32>
    %c0_27 = arith.constant 0 : index
    %c0_28 = arith.constant 0 : index
    %34 = vector.load %arg10[%c0_27, %c0_28] : memref<4x1xf32, #tpu.memory_space<vmem>>, vector<4x1xf32>
    %35 = vector.broadcast %34 : vector<4x1xf32> to vector<4x256xf32>
    %36 = arith.addf %33, %35 : vector<4x256xf32>
    %37 = arith.negf %36 : vector<4x256xf32>
    %38 = math.exp %37 : vector<4x256xf32>
    %cst_29 = arith.constant 1.000000e+00 : f32
    %39 = vector.broadcast %cst_29 : f32 to vector<4x256xf32>
    %40 = arith.addf %39, %38 : vector<4x256xf32>
    %41 = arith.divf %39, %40 : vector<4x256xf32>
    %c0_30 = arith.constant 0 : index
    %c0_31 = arith.constant 0 : index
    %c0_32 = arith.constant 0 : index
    %42 = vector.load %arg11[%c0_30, %c0_31, %c0_32] : memref<1x4x256xf32, #tpu.memory_space<vmem>>, vector<1x4x256xf32>
    %43 = vector.shape_cast %42 : vector<1x4x256xf32> to vector<4x256xf32>
    %44 = vector.shape_cast %41 : vector<4x256xf32> to vector<1x4x256xf32>
    tpu.vector_store %arg11[%c0_30, %c0_31, %c0_32], %44 {strides = array<i32>} : memref<1x4x256xf32, #tpu.memory_space<vmem>>, vector<1x4x256xf32>,
    return
  }
  func.func @transform_0(%arg0: i32) -> (i32, i32, i32) {
    %c0_i32 = arith.constant 0 : i32
    %c0_i32_0 = arith.constant 0 : i32
    %c0_i32_1 = arith.constant 0 : i32
    return %arg0, %c0_i32, %c0_i32_0 : i32, i32, i32
  }
  func.func @transform_1(%arg0: i32) -> (i32, i32) {
    %c0_i32 = arith.constant 0 : i32
    %c0_i32_0 = arith.constant 0 : i32
    %c0_i32_1 = arith.constant 0 : i32
    return %c0_i32, %c0_i32_0 : i32, i32
  }
  func.func @transform_2(%arg0: i32) -> (i32, i32) {
    %c0_i32 = arith.constant 0 : i32
    %c0_i32_0 = arith.constant 0 : i32
    %c0_i32_1 = arith.constant 0 : i32
    return %c0_i32, %c0_i32_0 : i32, i32
  }
  func.func @transform_3(%arg0: i32) -> (i32, i32) {
    %c0_i32 = arith.constant 0 : i32
    %c0_i32_0 = arith.constant 0 : i32
    %c0_i32_1 = arith.constant 0 : i32
    return %c0_i32, %c0_i32_0 : i32, i32
  }
  func.func @transform_4(%arg0: i32) -> (i32, i32) {
    %c0_i32 = arith.constant 0 : i32
    %c0_i32_0 = arith.constant 0 : i32
    %c0_i32_1 = arith.constant 0 : i32
    return %c0_i32, %c0_i32_0 : i32, i32
  }
  func.func @transform_5(%arg0: i32) -> (i32, i32) {
    %c0_i32 = arith.constant 0 : i32
    %c0_i32_0 = arith.constant 0 : i32
    %c0_i32_1 = arith.constant 0 : i32
    return %c0_i32, %c0_i32_0 : i32, i32
  }
  func.func @transform_6(%arg0: i32) -> (i32, i32) {
    %c0_i32 = arith.constant 0 : i32
    %c0_i32_0 = arith.constant 0 : i32
    %c0_i32_1 = arith.constant 0 : i32
    return %c0_i32, %c0_i32_0 : i32, i32
  }
  func.func @transform_7(%arg0: i32) -> (i32, i32) {
    %c0_i32 = arith.constant 0 : i32
    %c0_i32_0 = arith.constant 0 : i32
    %c0_i32_1 = arith.constant 0 : i32
    return %c0_i32, %c0_i32_0 : i32, i32
  }
  func.func @transform_8(%arg0: i32) -> (i32, i32) {
    %c0_i32 = arith.constant 0 : i32
    %c0_i32_0 = arith.constant 0 : i32
    %c0_i32_1 = arith.constant 0 : i32
    return %c0_i32, %c0_i32_0 : i32, i32
  }
  func.func @transform_9(%arg0: i32) -> (i32, i32) {
    %c0_i32 = arith.constant 0 : i32
    %c0_i32_0 = arith.constant 0 : i32
    %c0_i32_1 = arith.constant 0 : i32
    return %c0_i32, %c0_i32_0 : i32, i32
  }
  func.func @transform_10(%arg0: i32) -> (i32, i32, i32) {
    %c0_i32 = arith.constant 0 : i32
    %c0_i32_0 = arith.constant 0 : i32
    %c0_i32_1 = arith.constant 0 : i32
    return %arg0, %c0_i32, %c0_i32_0 : i32, i32, i32
  }
}

</mosaic_0001>

<llo_original>
// kernel: tpu_custom_call.1
$region0: #{tpu_custom_call.1}
  #allocation0 [shape = 'u32[]', space=smem, size = 0x4, offset = 0x4, fixed_abs, tag = 'smem constant byte address 0x4 - core index']
  #allocation1 [shape = 'u32[144,128]{1,0:T(1,128)}', space=vmem, size = 0x12000, scoped, tag = 'internal scratch']
  %s0 = inlined_call_operand.vmem [shape: f32[2,4,256], index: 0, kind: input, shape index: {}]
  %s1 = inlined_call_operand.vmem [shape: f32[256,16], index: 1, kind: input, shape index: {}]
  %s2 = inlined_call_operand.vmem [shape: f32[256,16], index: 2, kind: input, shape index: {}]
  %s3 = inlined_call_operand.vmem [shape: f32[16,256], index: 3, kind: input, shape index: {}]
  %s4 = inlined_call_operand.vmem [shape: f32[16,256], index: 4, kind: input, shape index: {}]
  %s5 = inlined_call_operand.vmem [shape: f32[4,12], index: 5, kind: input, shape index: {}]
  %s6 = inlined_call_operand.vmem [shape: f32[4,12], index: 6, kind: input, shape index: {}]
  %s7 = inlined_call_operand.vmem [shape: f32[4,1], index: 7, kind: input, shape index: {}]
  %s8 = inlined_call_operand.vmem [shape: f32[4,4], index: 8, kind: input, shape index: {}]
  %s9 = inlined_call_operand.vmem [shape: f32[4,1], index: 9, kind: input, shape index: {}]
  %s10 = inlined_call_operand.hbm [shape: f32[2,4,256], index: 10, kind: output, shape index: {}]
  %s11 = sld [smem:[#allocation0]]
  $region73: #{tpu_custom_call.1} parent=0
    _
  %s13 = ssub.s32 1, %s11
  %s14 = scalar_select 0, %s13, %s11
  $region1: #{tpu_custom_call.1} parent=0
    #allocation2 [shape = 'u8[8192]{0}', space=vmem, size = 0x2000, scoped, tag = 'output window, operand 0']
    #allocation3 [shape = 's32[2]{0}', space=sflag, size = 0x8, scoped, tag = 'scoped memory for tpu_custom_call.1']
    %15 = vsyncpa [#allocation3], 0
    %s16 = scalar_lea.sflag [#allocation3], 1
    %17 = vsyncpa %s16, 0
    loop: start=0, step=1, limit=4
    $region2: #{tpu_custom_call.1} parent=1 // loop_pre_header
      _
    $region3: #{tpu_custom_call.1} parent=1 // loop_header
      %s19 = sphi 0, %s23
      %p20 = scmp.ge.s32.totalorder %s19, 4
      %s29 = sphi 0, %s31
      %s32 = sphi 0, %s29
      %s33 = sphi 0, %s32
      %s49 = sphi 0, %s33
      %s53 = sphi 0, %s53
      %s55 = sphi 0, %s53
      %s56 = sphi 0, %s55
      %s70 = sphi 0, %s56
      %s74 = sphi 0, %s74
      %s76 = sphi 0, %s74
      %s77 = sphi 0, %s76
      %s91 = sphi 0, %s77
      %s95 = sphi 0, %s95
      %s97 = sphi 0, %s95
      %s98 = sphi 0, %s97
      %s112 = sphi 0, %s98
      %s116 = sphi 0, %s116
      %s118 = sphi 0, %s116
      %s119 = sphi 0, %s118
      %s133 = sphi 0, %s119
      %s137 = sphi 0, %s137
      %s139 = sphi 0, %s137
      %s140 = sphi 0, %s139
      %s154 = sphi 0, %s140
      %s158 = sphi 0, %s158
      %s160 = sphi 0, %s158
      %s161 = sphi 0, %s160
      %s175 = sphi 0, %s161
      %s179 = sphi 0, %s179
      %s181 = sphi 0, %s179
      %s182 = sphi 0, %s181
      %s196 = sphi 0, %s182
      %s200 = sphi 0, %s200
      %s202 = sphi 0, %s200
      %s203 = sphi 0, %s202
      %s217 = sphi 0, %s203
      %s221 = sphi 0, %s221
      %s223 = sphi 0, %s221
      %s224 = sphi 0, %s223
      %s238 = sphi 0, %s224
      %s244 = sphi 0, %s246
      %s247 = sphi 0, %s244
      %s248 = sphi 0, %s247
      %s264 = sphi 0, %s248
    $region4: #{tpu_custom_call.1} parent=1 // loop_header_branch
      %22 = sbr.rel (%p20) target = $region8
    $region5: #{tpu_custom_call.1} parent=1 // loop_body
      %s24 = ssub.s32 %s19, 1
      %s25 = ssub.s32 %s19, 2
      %s26 = sadd.s32 %s19, 1
      %s27 = ssub.s32 %s19, %s26
      %p28 = scmp.eq.s32.totalorder %s27, 0
      %s30 = sadd.s32 %s29, 1
      %s31 = scalar_select %p28, %s29, %s30
      %p34 = pneg %p28
      %p35 = scmp.eq.s32.totalorder %s19, 1
      %p36 = por %p34, %p35
      %p37 = scmp.ne.s32.totalorder %s29, %s32
      %p38 = scmp.eq.s32.totalorder %s19, 0
      %p39 = por %p37, %p38
      %p40 = scmp.ne.s32.totalorder %s29, %s32
      %p41 = scmp.eq.s32.totalorder %s24, 1
      %p42 = por %p40, %p41
      %p43 = scmp.ne.s32.totalorder %s32, %s33
      %p44 = scmp.eq.s32.totalorder %s24, 0
      %p45 = por %p43, %p44
      %p46 = scmp.ne.s32.totalorder %s32, %s33
      %p47 = scmp.eq.s32.totalorder %s25, 1
      %p48 = por %p46, %p47
      %p50 = scmp.ne.s32.totalorder %s33, %s49
      %p51 = scmp.eq.s32.totalorder %s25, 0
      %p52 = por %p50, %p51
      %s54 = sadd.s32 %s53, 1
      %p57 = scmp.eq.s32.totalorder %s19, 1
      %p58 = scmp.ne.s32.totalorder %s53, %s55
      %p59 = scmp.eq.s32.totalorder %s19, 0
      %p60 = por %p58, %p59
      %p61 = scmp.ne.s32.totalorder %s53, %s55
      %p62 = scmp.eq.s32.totalorder %s24, 1
      %p63 = por %p61, %p62
      %p64 = scmp.ne.s32.totalorder %s55, %s56
      %p65 = scmp.eq.s32.totalorder %s24, 0
      %p66 = por %p64, %p65
      %p67 = scmp.ne.s32.totalorder %s55, %s56
      %p68 = scmp.eq.s32.totalorder %s25, 1
      %p69 = por %p67, %p68
      %p71 = scmp.ne.s32.totalorder %s56, %s70
      %p72 = scmp.eq.s32.totalorder %s25, 0
      %p73 = por %p71, %p72
      %s75 = sadd.s32 %s74, 1
      %p78 = scmp.eq.s32.totalorder %s19, 1
      %p79 = scmp.ne.s32.totalorder %s74, %s76
      %p80 = scmp.eq.s32.totalorder %s19, 0
      %p81 = por %p79, %p80
      %p82 = scmp.ne.s32.totalorder %s74, %s76
      %p83 = scmp.eq.s32.totalorder %s24, 1
      %p84 = por %p82, %p83
      %p85 = scmp.ne.s32.totalorder %s76, %s77
      %p86 = scmp.eq.s32.totalorder %s24, 0
      %p87 = por %p85, %p86
      %p88 = scmp.ne.s32.totalorder %s76, %s77
      %p89 = scmp.eq.s32.totalorder %s25, 1
      %p90 = por %p88, %p89
      %p92 = scmp.ne.s32.totalorder %s77, %s91
      %p93 = scmp.eq.s32.totalorder %s25, 0
      %p94 = por %p92, %p93
      %s96 = sadd.s32 %s95, 1
      %p99 = scmp.eq.s32.totalorder %s19, 1
      %p100 = scmp.ne.s32.totalorder %s95, %s97
      %p101 = scmp.eq.s32.totalorder %s19, 0
      %p102 = por %p100, %p101
      %p103 = scmp.ne.s32.totalorder %s95, %s97
      %p104 = scmp.eq.s32.totalorder %s24, 1
      %p105 = por %p103, %p104
      %p106 = scmp.ne.s32.totalorder %s97, %s98
      %p107 = scmp.eq.s32.totalorder %s24, 0
      %p108 = por %p106, %p107
      %p109 = scmp.ne.s32.totalorder %s97, %s98
      %p110 = scmp.eq.s32.totalorder %s25, 1
      %p111 = por %p109, %p110
      %p113 = scmp.ne.s32.totalorder %s98, %s112
      %p114 = scmp.eq.s32.totalorder %s25, 0
      %p115 = por %p113, %p114
      %s117 = sadd.s32 %s116, 1
      %p120 = scmp.eq.s32.totalorder %s19, 1
      %p121 = scmp.ne.s32.totalorder %s116, %s118
      %p122 = scmp.eq.s32.totalorder %s19, 0
      %p123 = por %p121, %p122
      %p124 = scmp.ne.s32.totalorder %s116, %s118
      %p125 = scmp.eq.s32.totalorder %s24, 1
      %p126 = por %p124, %p125
      %p127 = scmp.ne.s32.totalorder %s118, %s119
      %p128 = scmp.eq.s32.totalorder %s24, 0
      %p129 = por %p127, %p128
      %p130 = scmp.ne.s32.totalorder %s118, %s119
      %p131 = scmp.eq.s32.totalorder %s25, 1
      %p132 = por %p130, %p131
      %p134 = scmp.ne.s32.totalorder %s119, %s133
      %p135 = scmp.eq.s32.totalorder %s25, 0
      %p136 = por %p134, %p135
      %s138 = sadd.s32 %s137, 1
      %p141 = scmp.eq.s32.totalorder %s19, 1
      %p142 = scmp.ne.s32.totalorder %s137, %s139
      %p143 = scmp.eq.s32.totalorder %s19, 0
      %p144 = por %p142, %p143
      %p145 = scmp.ne.s32.totalorder %s137, %s139
      %p146 = scmp.eq.s32.totalorder %s24, 1
      %p147 = por %p145, %p146
      %p148 = scmp.ne.s32.totalorder %s139, %s140
      %p149 = scmp.eq.s32.totalorder %s24, 0
      %p150 = por %p148, %p149
      %p151 = scmp.ne.s32.totalorder %s139, %s140
      %p152 = scmp.eq.s32.totalorder %s25, 1
      %p153 = por %p151, %p152
      %p155 = scmp.ne.s32.totalorder %s140, %s154
      %p156 = scmp.eq.s32.totalorder %s25, 0
      %p157 = por %p155, %p156
      %s159 = sadd.s32 %s158, 1
      %p162 = scmp.eq.s32.totalorder %s19, 1
      %p163 = scmp.ne.s32.totalorder %s158, %s160
      %p164 = scmp.eq.s32.totalorder %s19, 0
      %p165 = por %p163, %p164
      %p166 = scmp.ne.s32.totalorder %s158, %s160
      %p167 = scmp.eq.s32.totalorder %s24, 1
      %p168 = por %p166, %p167
      %p169 = scmp.ne.s32.totalorder %s160, %s161
      %p170 = scmp.eq.s32.totalorder %s24, 0
      %p171 = por %p169, %p170
      %p172 = scmp.ne.s32.totalorder %s160, %s161
      %p173 = scmp.eq.s32.totalorder %s25, 1
      %p174 = por %p172, %p173
      %p176 = scmp.ne.s32.totalorder %s161, %s175
      %p177 = scmp.eq.s32.totalorder %s25, 0
      %p178 = por %p176, %p177
      %s180 = sadd.s32 %s179, 1
      %p183 = scmp.eq.s32.totalorder %s19, 1
      %p184 = scmp.ne.s32.totalorder %s179, %s181
      %p185 = scmp.eq.s32.totalorder %s19, 0
      %p186 = por %p184, %p185
      %p187 = scmp.ne.s32.totalorder %s179, %s181
      %p188 = scmp.eq.s32.totalorder %s24, 1
      %p189 = por %p187, %p188
      %p190 = scmp.ne.s32.totalorder %s181, %s182
      %p191 = scmp.eq.s32.totalorder %s24, 0
      %p192 = por %p190, %p191
      %p193 = scmp.ne.s32.totalorder %s181, %s182
      %p194 = scmp.eq.s32.totalorder %s25, 1
      %p195 = por %p193, %p194
      %p197 = scmp.ne.s32.totalorder %s182, %s196
      %p198 = scmp.eq.s32.totalorder %s25, 0
      %p199 = por %p197, %p198
      %s201 = sadd.s32 %s200, 1
      %p204 = scmp.eq.s32.totalorder %s19, 1
      %p205 = scmp.ne.s32.totalorder %s200, %s202
      %p206 = scmp.eq.s32.totalorder %s19, 0
      %p207 = por %p205, %p206
      %p208 = scmp.ne.s32.totalorder %s200, %s202
      %p209 = scmp.eq.s32.totalorder %s24, 1
      %p210 = por %p208, %p209
      %p211 = scmp.ne.s32.totalorder %s202, %s203
      %p212 = scmp.eq.s32.totalorder %s24, 0
      %p213 = por %p211, %p212
      %p214 = scmp.ne.s32.totalorder %s202, %s203
      %p215 = scmp.eq.s32.totalorder %s25, 1
      %p216 = por %p214, %p215
      %p218 = scmp.ne.s32.totalorder %s203, %s217
      %p219 = scmp.eq.s32.totalorder %s25, 0
      %p220 = por %p218, %p219
      %s222 = sadd.s32 %s221, 1
      %p225 = scmp.eq.s32.totalorder %s19, 1
      %p226 = scmp.ne.s32.totalorder %s221, %s223
      %p227 = scmp.eq.s32.totalorder %s19, 0
      %p228 = por %p226, %p227
      %p229 = scmp.ne.s32.totalorder %s221, %s223
      %p230 = scmp.eq.s32.totalorder %s24, 1
      %p231 = por %p229, %p230
      %p232 = scmp.ne.s32.totalorder %s223, %s224
      %p233 = scmp.eq.s32.totalorder %s24, 0
      %p234 = por %p232, %p233
      %p235 = scmp.ne.s32.totalorder %s223, %s224
      %p236 = scmp.eq.s32.totalorder %s25, 1
      %p237 = por %p235, %p236
      %p239 = scmp.ne.s32.totalorder %s224, %s238
      %p240 = scmp.eq.s32.totalorder %s25, 0
      %p241 = por %p239, %p240
      %s242 = ssub.s32 %s19, %s26
      %p243 = scmp.eq.s32.totalorder %s242, 0
      %s245 = sadd.s32 %s244, 1
      %s246 = scalar_select %p243, %s244, %s245
      %p249 = pneg %p243
      %p250 = scmp.eq.s32.totalorder %s19, 1
      %p251 = por %p249, %p250
      %p252 = scmp.ne.s32.totalorder %s244, %s247
      %p253 = scmp.eq.s32.totalorder %s19, 0
      %p254 = por %p252, %p253
      %p255 = scmp.ne.s32.totalorder %s244, %s247
      %p256 = scmp.eq.s32.totalorder %s24, 1
      %p257 = por %p255, %p256
      %p258 = scmp.ne.s32.totalorder %s247, %s248
      %p259 = scmp.eq.s32.totalorder %s24, 0
      %p260 = por %p258, %p259
      %p261 = scmp.ne.s32.totalorder %s247, %s248
      %p262 = scmp.eq.s32.totalorder %s25, 1
      %p263 = por %p261, %p262
      %p265 = scmp.ne.s32.totalorder %s248, %s264
      %p266 = scmp.eq.s32.totalorder %s25, 0
      %p267 = por %p265, %p266
      %p268 = scmp.le.s32.totalorder 1, %s19
      %p269 = scmp.lt.s32.totalorder %s19, 3
      %p270 = pnand %p268, %p269
      %p271 = pneg %p270
      // Predicated region
      $region9: #{tpu_custom_call.1} parent=5 // pred_check
        _
      $region10: #{tpu_custom_call.1} parent=5 // pred_check_branch
        %273 = sbr.rel (%p270) target = $region12
      $region11: #{tpu_custom_call.1} parent=5 // pred_region
        %s274 = ssub.s32 %s19, 1
        // Predicated region
        $region13: #{tpu_custom_call.1} parent=11 // pred_check
          %p275 = pneg %p66
        $region14: #{tpu_custom_call.1} parent=11 // pred_check_branch
          %277 = sbr.rel (%p275) target = $region16
        $region15: #{tpu_custom_call.1} parent=11 // pred_region
          _
        $region16: #{tpu_custom_call.1} parent=11 // pred_fallthru
          _
        // Predicated region
        $region17: #{tpu_custom_call.1} parent=11 // pred_check
          %p278 = pneg %p87
        $region18: #{tpu_custom_call.1} parent=11 // pred_check_branch
          %280 = sbr.rel (%p278) target = $region20
        $region19: #{tpu_custom_call.1} parent=11 // pred_region
          _
        $region20: #{tpu_custom_call.1} parent=11 // pred_fallthru
          _
        // Predicated region
        $region21: #{tpu_custom_call.1} parent=11 // pred_check
          %p281 = pneg %p108
        $region22: #{tpu_custom_call.1} parent=11 // pred_check_branch
          %283 = sbr.rel (%p281) target = $region24
        $region23: #{tpu_custom_call.1} parent=11 // pred_region
          _
        $region24: #{tpu_custom_call.1} parent=11 // pred_fallthru
          _
        // Predicated region
        $region25: #{tpu_custom_call.1} parent=11 // pred_check
          %p284 = pneg %p129
        $region26: #{tpu_custom_call.1} parent=11 // pred_check_branch
          %286 = sbr.rel (%p284) target = $region28
        $region27: #{tpu_custom_call.1} parent=11 // pred_region
          _
        $region28: #{tpu_custom_call.1} parent=11 // pred_fallthru
          _
        // Predicated region
        $region29: #{tpu_custom_call.1} parent=11 // pred_check
          %p287 = pneg %p150
        $region30: #{tpu_custom_call.1} parent=11 // pred_check_branch
          %289 = sbr.rel (%p287) target = $region32
        $region31: #{tpu_custom_call.1} parent=11 // pred_region
          _
        $region32: #{tpu_custom_call.1} parent=11 // pred_fallthru
          _
        // Predicated region
        $region33: #{tpu_custom_call.1} parent=11 // pred_check
          %p290 = pneg %p171
        $region34: #{tpu_custom_call.1} parent=11 // pred_check_branch
          %292 = sbr.rel (%p290) target = $region36
        $region35: #{tpu_custom_call.1} parent=11 // pred_region
          _
        $region36: #{tpu_custom_call.1} parent=11 // pred_fallthru
          _
        // Predicated region
        $region37: #{tpu_custom_call.1} parent=11 // pred_check
          %p293 = pneg %p192
        $region38: #{tpu_custom_call.1} parent=11 // pred_check_branch
          %295 = sbr.rel (%p293) target = $region40
        $region39: #{tpu_custom_call.1} parent=11 // pred_region
          _
        $region40: #{tpu_custom_call.1} parent=11 // pred_fallthru
          _
        // Predicated region
        $region41: #{tpu_custom_call.1} parent=11 // pred_check
          %p296 = pneg %p213
        $region42: #{tpu_custom_call.1} parent=11 // pred_check_branch
          %298 = sbr.rel (%p296) target = $region44
        $region43: #{tpu_custom_call.1} parent=11 // pred_region
          _
        $region44: #{tpu_custom_call.1} parent=11 // pred_fallthru
          _
        // Predicated region
        $region45: #{tpu_custom_call.1} parent=11 // pred_check
          %p299 = pneg %p234
        $region46: #{tpu_custom_call.1} parent=11 // pred_check_branch
          %301 = sbr.rel (%p299) target = $region48
        $region47: #{tpu_custom_call.1} parent=11 // pred_region
          _
        $region48: #{tpu_custom_call.1} parent=11 // pred_fallthru
          _
      $region12: #{tpu_custom_call.1} parent=5 // pred_fallthru
        _
      %p302 = scmp.lt.s32.totalorder %s19, 2
      // Predicated region
      $region49: #{tpu_custom_call.1} parent=5 // pred_check
        %p303 = pneg %p302
      $region50: #{tpu_custom_call.1} parent=5 // pred_check_branch
        %305 = sbr.rel (%p303) target = $region52
      $region51: #{tpu_custom_call.1} parent=5 // pred_region
        // Predicated region
        $region53: #{tpu_custom_call.1} parent=51 // pred_check
          %p306 = pneg %p39
        $region54: #{tpu_custom_call.1} parent=51 // pred_check_branch
          %308 = sbr.rel (%p306) target = $region56
        $region55: #{tpu_custom_call.1} parent=51 // pred_region
          %p309 = scmp.lt.s32.totalorder %s19, 1
          %s310 = scalar_select %p309, %s19, 1
          %s311 = smul.addr %s310, 2
          %s312 = smul.addr %s311, 4
          %s313 = scalar_lea.vmem %s0, %s312
        $region56: #{tpu_custom_call.1} parent=51 // pred_fallthru
          _
      $region52: #{tpu_custom_call.1} parent=5 // pred_fallthru
        _
      %p314 = scmp.le.s32.totalorder 1, %s19
      %p315 = scmp.lt.s32.totalorder %s19, 3
      %p316 = pnand %p314, %p315
      %p317 = pneg %p316
      // Predicated region
      $region57: #{tpu_custom_call.1} parent=5 // pred_check
        _
      $region58: #{tpu_custom_call.1} parent=5 // pred_check_branch
        %319 = sbr.rel (%p316) target = $region60
      $region59: #{tpu_custom_call.1} parent=5 // pred_region
        %s320 = ssub.s32 %s19, 1
        %p321 = scmp.lt.s32.totalorder %s24, 1
        %s322 = scalar_select %p321, %s24, 1
        %s323 = smul.addr %s322, 2
        %s324 = smul.addr %s323, 4
        %s325 = scalar_lea.vmem %s0, %s324
        %p326 = pneg %p45
        %p327 = pneg %p42
        %p328 = pneg %p66
        %p329 = pneg %p63
        %p330 = pneg %p87
        %p331 = pneg %p84
        %p332 = pneg %p108
        %p333 = pneg %p105
        %p334 = pneg %p129
        %p335 = pneg %p126
        %p336 = pneg %p150
        %p337 = pneg %p147
        %p338 = pneg %p171
        %p339 = pneg %p168
        %p340 = pneg %p192
        %p341 = pneg %p189
        %p342 = pneg %p213
        %p343 = pneg %p210
        %p344 = pneg %p234
        %p345 = pneg %p231
        %p346 = pneg %p260
        %p347 = pneg %p257
        %s348 = sand.u32 %s247, 1
        %s349 = scalar_lea.sflag [#allocation3], %s348
        %s350 = sand.u32 %s247, 1
        %s351 = smul.addr %s350, 8
        %s352 = scalar_lea.vmem [#allocation2], %s351
        %p353 = scmp.lt.s32.totalorder %s24, 1
        %s354 = scalar_select %p353, %s24, 1
        %s355 = smul.addr %s354, 2
        %s356 = smul.addr %s355, 4
        %s357 = scalar_lea.vmem %s0, %s356
        %v358 = vld [vmem:[%s357] sm:$0xff]
        %v359 = vld [vmem:[%s1] sm:$0xff]
        %v360 = vld [vmem:[%s1 + $0x8] sm:$0xff]
        %v361 = vld [vmem:[%s1 + $0x10] sm:$0xff]
        %v362 = vld [vmem:[%s1 + $0x18] sm:$0xff]
        %v363 = vld [vmem:[%s1 + $0x20] sm:$0xff]
        %v364 = vld [vmem:[%s1 + $0x28] sm:$0xff]
        %v365 = vld [vmem:[%s1 + $0x30] sm:$0xff]
        %v366 = vld [vmem:[%s1 + $0x38] sm:$0xff]
        %v367 = vld [vmem:[%s1 + $0x40] sm:$0xff]
        %v368 = vld [vmem:[%s1 + $0x48] sm:$0xff]
        %v369 = vld [vmem:[%s1 + $0x50] sm:$0xff]
        %v370 = vld [vmem:[%s1 + $0x58] sm:$0xff]
        %v371 = vld [vmem:[%s1 + $0x60] sm:$0xff]
        %v372 = vld [vmem:[%s1 + $0x68] sm:$0xff]
        %v373 = vld [vmem:[%s1 + $0x70] sm:$0xff]
        %v374 = vld [vmem:[%s1 + $0x78] sm:$0xff]
        %v375 = vld [vmem:[%s1 + $0x80] sm:$0xff]
        %v376 = vld [vmem:[%s1 + $0x88] sm:$0xff]
        %v377 = vld [vmem:[%s1 + $0x90] sm:$0xff]
        %v378 = vld [vmem:[%s1 + $0x98] sm:$0xff]
        %v379 = vld [vmem:[%s1 + $0xa0] sm:$0xff]
        %v380 = vld [vmem:[%s1 + $0xa8] sm:$0xff]
        %v381 = vld [vmem:[%s1 + $0xb0] sm:$0xff]
        %v382 = vld [vmem:[%s1 + $0xb8] sm:$0xff]
        %v383 = vld [vmem:[%s1 + $0xc0] sm:$0xff]
        %v384 = vld [vmem:[%s1 + $0xc8] sm:$0xff]
        %v385 = vld [vmem:[%s1 + $0xd0] sm:$0xff]
        %v386 = vld [vmem:[%s1 + $0xd8] sm:$0xff]
        %v387 = vld [vmem:[%s1 + $0xe0] sm:$0xff]
        %v388 = vld [vmem:[%s1 + $0xe8] sm:$0xff]
        %v389 = vld [vmem:[%s1 + $0xf0] sm:$0xff]
        %v390 = vld [vmem:[%s1 + $0xf8] sm:$0xff]
        %v392 = vcombine.high %v358, %v358
        %394 = vmatprep.subr.mxu0 0.0
        %395 = vmatpush1.msra.mxu0 %v374
        %396 = vmatprep.subr.mxu0 0.0
        %397 = vmatpush1.msra.mxu0 %v373
        %398 = vmatprep.subr.mxu0 0.0
        %399 = vmatpush1.msra.mxu0 %v372
        %400 = vmatprep.subr.mxu0 0.0
        %401 = vmatpush1.msra.mxu0 %v371
        %402 = vmatprep.subr.mxu0 0.0
        %403 = vmatpush1.msra.mxu0 %v370
        %404 = vmatprep.subr.mxu0 0.0
        %405 = vmatpush1.msra.mxu0 %v369
        %406 = vmatprep.subr.mxu0 0.0
        %407 = vmatpush1.msra.mxu0 %v368
        %408 = vmatprep.subr.mxu0 0.0
        %409 = vmatpush1.msra.mxu0 %v367
        %410 = vmatprep.subr.mxu0 0.0
        %411 = vmatpush1.msra.mxu0 %v366
        %412 = vmatprep.subr.mxu0 0.0
        %413 = vmatpush1.msra.mxu0 %v365
        %414 = vmatprep.subr.mxu0 0.0
        %415 = vmatpush1.msra.mxu0 %v364
        %416 = vmatprep.subr.mxu0 0.0
        %417 = vmatpush1.msra.mxu0 %v363
        %418 = vmatprep.subr.mxu0 0.0
        %419 = vmatpush1.msra.mxu0 %v362
        %420 = vmatprep.subr.mxu0 0.0
        %421 = vmatpush1.msra.mxu0 %v361
        %422 = vmatprep.subr.mxu0 0.0
        %423 = vmatpush1.msra.mxu0 %v360
        %424 = vmatprep.subr.mxu0 0.0
        %425 = vmatpush1.msra.mxu0 %v359
        %426 = vmatprep.subr.mxu0 0.0
        %427 = vmatpush2.msra.mxu0 %v390
        %428 = vmatprep.subr.mxu0 0.0
        %429 = vmatpush2.msra.mxu0 %v389
        %430 = vmatprep.subr.mxu0 0.0
        %431 = vmatpush2.msra.mxu0 %v388
        %432 = vmatprep.subr.mxu0 0.0
        %433 = vmatpush2.msra.mxu0 %v387
        %434 = vmatprep.subr.mxu0 0.0
        %435 = vmatpush2.msra.mxu0 %v386
        %436 = vmatprep.subr.mxu0 0.0
        %437 = vmatpush2.msra.mxu0 %v385
        %438 = vmatprep.subr.mxu0 0.0
        %439 = vmatpush2.msra.mxu0 %v384
        %440 = vmatprep.subr.mxu0 0.0
        %441 = vmatpush2.msra.mxu0 %v383
        %442 = vmatprep.subr.mxu0 0.0
        %443 = vmatpush2.msra.mxu0 %v382
        %444 = vmatprep.subr.mxu0 0.0
        %445 = vmatpush2.msra.mxu0 %v381
        %446 = vmatprep.subr.mxu0 0.0
        %447 = vmatpush2.msra.mxu0 %v380
        %448 = vmatprep.subr.mxu0 0.0
        %449 = vmatpush2.msra.mxu0 %v379
        %450 = vmatprep.subr.mxu0 0.0
        %451 = vmatpush2.msra.mxu0 %v378
        %452 = vmatprep.subr.mxu0 0.0
        %453 = vmatpush2.msra.mxu0 %v377
        %454 = vmatprep.subr.mxu0 0.0
        %455 = vmatpush2.msra.mxu0 %v376
        %456 = vmatprep.subr.mxu0 0.0
        %457 = vmatpush2.msra.mxu0 %v375
        %458 = vmatprep.mubr.f32.mxu0 %v392
        %459 = vmatmul.mubr.f32.gmra.mxu0 %v358
        %v460 = vpop.f32.mrf.mxu0
        %v461 = vadd.f32 0.0, %v460
        %v462 = vpop.f32.mrf.mxu0
        %463 = vdwg.mxu0
        %v464 = vld [vmem:[%s2] sm:$0xff]
        %v465 = vld [vmem:[%s2 + $0x8] sm:$0xff]
        %v466 = vld [vmem:[%s2 + $0x10] sm:$0xff]
        %v467 = vld [vmem:[%s2 + $0x18] sm:$0xff]
        %v468 = vld [vmem:[%s2 + $0x20] sm:$0xff]
        %v469 = vld [vmem:[%s2 + $0x28] sm:$0xff]
        %v470 = vld [vmem:[%s2 + $0x30] sm:$0xff]
        %v471 = vld [vmem:[%s2 + $0x38] sm:$0xff]
        %v472 = vld [vmem:[%s2 + $0x40] sm:$0xff]
        %v473 = vld [vmem:[%s2 + $0x48] sm:$0xff]
        %v474 = vld [vmem:[%s2 + $0x50] sm:$0xff]
        %v475 = vld [vmem:[%s2 + $0x58] sm:$0xff]
        %v476 = vld [vmem:[%s2 + $0x60] sm:$0xff]
        %v477 = vld [vmem:[%s2 + $0x68] sm:$0xff]
        %v478 = vld [vmem:[%s2 + $0x70] sm:$0xff]
        %v479 = vld [vmem:[%s2 + $0x78] sm:$0xff]
        %v480 = vld [vmem:[%s2 + $0x80] sm:$0xff]
        %v481 = vld [vmem:[%s2 + $0x88] sm:$0xff]
        %v482 = vld [vmem:[%s2 + $0x90] sm:$0xff]
        %v483 = vld [vmem:[%s2 + $0x98] sm:$0xff]
        %v484 = vld [vmem:[%s2 + $0xa0] sm:$0xff]
        %v485 = vld [vmem:[%s2 + $0xa8] sm:$0xff]
        %v486 = vld [vmem:[%s2 + $0xb0] sm:$0xff]
        %v487 = vld [vmem:[%s2 + $0xb8] sm:$0xff]
        %v488 = vld [vmem:[%s2 + $0xc0] sm:$0xff]
        %v489 = vld [vmem:[%s2 + $0xc8] sm:$0xff]
        %v490 = vld [vmem:[%s2 + $0xd0] sm:$0xff]
        %v491 = vld [vmem:[%s2 + $0xd8] sm:$0xff]
        %v492 = vld [vmem:[%s2 + $0xe0] sm:$0xff]
        %v493 = vld [vmem:[%s2 + $0xe8] sm:$0xff]
        %v494 = vld [vmem:[%s2 + $0xf0] sm:$0xff]
        %v495 = vld [vmem:[%s2 + $0xf8] sm:$0xff]
        %496 = vmatprep.subr.mxu0 0.0
        %497 = vmatpush1.msra.mxu0 %v479
        %498 = vmatprep.subr.mxu0 0.0
        %499 = vmatpush1.msra.mxu0 %v478
        %500 = vmatprep.subr.mxu0 0.0
        %501 = vmatpush1.msra.mxu0 %v477
        %502 = vmatprep.subr.mxu0 0.0
        %503 = vmatpush1.msra.mxu0 %v476
        %504 = vmatprep.subr.mxu0 0.0
        %505 = vmatpush1.msra.mxu0 %v475
        %506 = vmatprep.subr.mxu0 0.0
        %507 = vmatpush1.msra.mxu0 %v474
        %508 = vmatprep.subr.mxu0 0.0
        %509 = vmatpush1.msra.mxu0 %v473
        %510 = vmatprep.subr.mxu0 0.0
        %511 = vmatpush1.msra.mxu0 %v472
        %512 = vmatprep.subr.mxu0 0.0
        %513 = vmatpush1.msra.mxu0 %v471
        %514 = vmatprep.subr.mxu0 0.0
        %515 = vmatpush1.msra.mxu0 %v470
        %516 = vmatprep.subr.mxu0 0.0
        %517 = vmatpush1.msra.mxu0 %v469
        %518 = vmatprep.subr.mxu0 0.0
        %519 = vmatpush1.msra.mxu0 %v468
        %520 = vmatprep.subr.mxu0 0.0
        %521 = vmatpush1.msra.mxu0 %v467
        %522 = vmatprep.subr.mxu0 0.0
        %523 = vmatpush1.msra.mxu0 %v466
        %524 = vmatprep.subr.mxu0 0.0
        %525 = vmatpush1.msra.mxu0 %v465
        %526 = vmatprep.subr.mxu0 0.0
        %527 = vmatpush1.msra.mxu0 %v464
        %528 = vmatprep.subr.mxu0 0.0
        %529 = vmatpush2.msra.mxu0 %v495
        %530 = vmatprep.subr.mxu0 0.0
        %531 = vmatpush2.msra.mxu0 %v494
        %532 = vmatprep.subr.mxu0 0.0
        %533 = vmatpush2.msra.mxu0 %v493
        %534 = vmatprep.subr.mxu0 0.0
        %535 = vmatpush2.msra.mxu0 %v492
        %536 = vmatprep.subr.mxu0 0.0
        %537 = vmatpush2.msra.mxu0 %v491
        %538 = vmatprep.subr.mxu0 0.0
        %539 = vmatpush2.msra.mxu0 %v490
        %540 = vmatprep.subr.mxu0 0.0
        %541 = vmatpush2.msra.mxu0 %v489
        %542 = vmatprep.subr.mxu0 0.0
        %543 = vmatpush2.msra.mxu0 %v488
        %544 = vmatprep.subr.mxu0 0.0
        %545 = vmatpush2.msra.mxu0 %v487
        %546 = vmatprep.subr.mxu0 0.0
        %547 = vmatpush2.msra.mxu0 %v486
        %548 = vmatprep.subr.mxu0 0.0
        %549 = vmatpush2.msra.mxu0 %v485
        %550 = vmatprep.subr.mxu0 0.0
        %551 = vmatpush2.msra.mxu0 %v484
        %552 = vmatprep.subr.mxu0 0.0
        %553 = vmatpush2.msra.mxu0 %v483
        %554 = vmatprep.subr.mxu0 0.0
        %555 = vmatpush2.msra.mxu0 %v482
        %556 = vmatprep.subr.mxu0 0.0
        %557 = vmatpush2.msra.mxu0 %v481
        %558 = vmatprep.subr.mxu0 0.0
        %559 = vmatpush2.msra.mxu0 %v480
        %560 = vmatprep.mubr.f32.mxu0 %v392
        %561 = vmatmul.mubr.f32.gmra.mxu0 %v358
        %v562 = vpop.f32.mrf.mxu0
        %v563 = vadd.f32 0.0, %v562
        %v564 = vpop.f32.mrf.mxu0
        %565 = vdwg.mxu0
        %v566 = vld [vmem:[%s5] sm:$0xf]
        %568 = vrot.lane.b32.xlu0 %v461, 1
        %v569 = vpop.permute.xlu0 %568
        %vm571 = vcmask 7168
        %v572 = vsel %vm571, 0.0, %v569
        %573 = vrot.lane.b32.xlu0 %v461, 127
        %v574 = vpop.permute.xlu0 %573
        %vm576 = vcmask 121856
        %v577 = vsel %vm576, %v574, 0.0
        %v578 = vrot.slane %v461, 4
        %vm580 = vcmask 1043456
        %v581 = vsel %vm580, %v572, %v578
        %vm582 = vcmask 97280
        %v584 = vsel %vm582, %v566, 0
        %v587 = vsel %vm580, %v577, 0
        %589 = vmatprep.subr.mxu0 0.0
        %590 = vmatpush1.msra.mxu0 0.0
        %591 = vmatprep.subr.mxu0 0.0
        %592 = vmatpush1.msra.mxu0 0.0
        %593 = vmatprep.subr.mxu0 0.0
        %594 = vmatpush1.msra.mxu0 0.0
        %595 = vmatprep.subr.mxu0 0.0
        %596 = vmatpush1.msra.mxu0 0.0
        %597 = vmatprep.subr.mxu0 0.0
        %598 = vmatpush1.msra.mxu0 0.0
        %599 = vmatprep.subr.mxu0 0.0
        %600 = vmatpush1.msra.mxu0 0.0
        %601 = vmatprep.subr.mxu0 0.0
        %602 = vmatpush1.msra.mxu0 0.0
        %603 = vmatprep.subr.mxu0 0.0
        %604 = vmatpush1.msra.mxu0 0.0
        %605 = vmatprep.subr.mxu0 0.0
        %606 = vmatpush1.msra.mxu0 0.0
        %607 = vmatprep.subr.mxu0 0.0
        %608 = vmatpush1.msra.mxu0 0.0
        %609 = vmatprep.subr.mxu0 0.0
        %610 = vmatpush1.msra.mxu0 0.0
        %611 = vmatprep.subr.mxu0 0.0
        %612 = vmatpush1.msra.mxu0 0.0
        %613 = vmatprep.subr.mxu0 0.0
        %614 = vmatpush1.msra.mxu0 0.0
        %615 = vmatprep.subr.mxu0 0.0
        %616 = vmatpush1.msra.mxu0 0.0
        %617 = vmatprep.subr.mxu0 0.0
        %618 = vmatpush1.msra.mxu0 %v587
        %619 = vmatprep.subr.mxu0 0.0
        %620 = vmatpush1.msra.mxu0 %v581
        %621 = vmatprep.subr.mxu0 0.0
        %622 = vmatpush2.msra.mxu0 0.0
        %623 = vmatprep.subr.mxu0 0.0
        %624 = vmatpush2.msra.mxu0 0.0
        %625 = vmatprep.subr.mxu0 0.0
        %626 = vmatpush2.msra.mxu0 0.0
        %627 = vmatprep.subr.mxu0 0.0
        %628 = vmatpush2.msra.mxu0 0.0
        %629 = vmatprep.subr.mxu0 0.0
        %630 = vmatpush2.msra.mxu0 0.0
        %631 = vmatprep.subr.mxu0 0.0
        %632 = vmatpush2.msra.mxu0 0.0
        %633 = vmatprep.subr.mxu0 0.0
        %634 = vmatpush2.msra.mxu0 0.0
        %635 = vmatprep.subr.mxu0 0.0
        %636 = vmatpush2.msra.mxu0 0.0
        %637 = vmatprep.subr.mxu0 0.0
        %638 = vmatpush2.msra.mxu0 0.0
        %639 = vmatprep.subr.mxu0 0.0
        %640 = vmatpush2.msra.mxu0 0.0
        %641 = vmatprep.subr.mxu0 0.0
        %642 = vmatpush2.msra.mxu0 0.0
        %643 = vmatprep.subr.mxu0 0.0
        %644 = vmatpush2.msra.mxu0 0.0
        %645 = vmatprep.subr.mxu0 0.0
        %646 = vmatpush2.msra.mxu0 0.0
        %647 = vmatprep.subr.mxu0 0.0
        %648 = vmatpush2.msra.mxu0 0.0
        %649 = vmatprep.subr.mxu0 0.0
        %650 = vmatpush2.msra.mxu0 0.0
        %651 = vmatprep.subr.mxu0 0.0
        %652 = vmatpush2.msra.mxu0 0.0
        %653 = vmatprep.mubr.f32.mxu0 0.0
        %654 = vmatmul.mubr.f32.gmra.mxu0 %v584
        %v655 = vpop.f32.mrf.mxu0
        %v656 = vadd.f32 0.0, %v655
        %v657 = vpop.f32.mrf.mxu0
        %658 = vdwg.mxu0
        %v659 = vld [vmem:[%s6] sm:$0xf]
        %661 = vrot.lane.b32.xlu0 %v563, 1
        %v662 = vpop.permute.xlu0 %661
        %v664 = vsel %vm571, 0.0, %v662
        %665 = vrot.lane.b32.xlu0 %v563, 127
        %v666 = vpop.permute.xlu0 %665
        %v668 = vsel %vm576, %v666, 0.0
        %v669 = vrot.slane %v563, 4
        %v671 = vsel %vm580, %v664, %v669
        %v673 = vsel %vm582, %v659, 0
        %v676 = vsel %vm580, %v668, 0
        %678 = vmatprep.subr.mxu0 0.0
        %679 = vmatpush1.msra.mxu0 0.0
        %680 = vmatprep.subr.mxu0 0.0
        %681 = vmatpush1.msra.mxu0 0.0
        %682 = vmatprep.subr.mxu0 0.0
        %683 = vmatpush1.msra.mxu0 0.0
        %684 = vmatprep.subr.mxu0 0.0
        %685 = vmatpush1.msra.mxu0 0.0
        %686 = vmatprep.subr.mxu0 0.0
        %687 = vmatpush1.msra.mxu0 0.0
        %688 = vmatprep.subr.mxu0 0.0
        %689 = vmatpush1.msra.mxu0 0.0
        %690 = vmatprep.subr.mxu0 0.0
        %691 = vmatpush1.msra.mxu0 0.0
        %692 = vmatprep.subr.mxu0 0.0
        %693 = vmatpush1.msra.mxu0 0.0
        %694 = vmatprep.subr.mxu0 0.0
        %695 = vmatpush1.msra.mxu0 0.0
        %696 = vmatprep.subr.mxu0 0.0
        %697 = vmatpush1.msra.mxu0 0.0
        %698 = vmatprep.subr.mxu0 0.0
        %699 = vmatpush1.msra.mxu0 0.0
        %700 = vmatprep.subr.mxu0 0.0
        %701 = vmatpush1.msra.mxu0 0.0
        %702 = vmatprep.subr.mxu0 0.0
        %703 = vmatpush1.msra.mxu0 0.0
        %704 = vmatprep.subr.mxu0 0.0
        %705 = vmatpush1.msra.mxu0 0.0
        %706 = vmatprep.subr.mxu0 0.0
        %707 = vmatpush1.msra.mxu0 %v676
        %708 = vmatprep.subr.mxu0 0.0
        %709 = vmatpush1.msra.mxu0 %v671
        %710 = vmatprep.subr.mxu0 0.0
        %711 = vmatpush2.msra.mxu0 0.0
        %712 = vmatprep.subr.mxu0 0.0
        %713 = vmatpush2.msra.mxu0 0.0
        %714 = vmatprep.subr.mxu0 0.0
        %715 = vmatpush2.msra.mxu0 0.0
        %716 = vmatprep.subr.mxu0 0.0
        %717 = vmatpush2.msra.mxu0 0.0
        %718 = vmatprep.subr.mxu0 0.0
        %719 = vmatpush2.msra.mxu0 0.0
        %720 = vmatprep.subr.mxu0 0.0
        %721 = vmatpush2.msra.mxu0 0.0
        %722 = vmatprep.subr.mxu0 0.0
        %723 = vmatpush2.msra.mxu0 0.0
        %724 = vmatprep.subr.mxu0 0.0
        %725 = vmatpush2.msra.mxu0 0.0
        %726 = vmatprep.subr.mxu0 0.0
        %727 = vmatpush2.msra.mxu0 0.0
        %728 = vmatprep.subr.mxu0 0.0
        %729 = vmatpush2.msra.mxu0 0.0
        %730 = vmatprep.subr.mxu0 0.0
        %731 = vmatpush2.msra.mxu0 0.0
        %732 = vmatprep.subr.mxu0 0.0
        %733 = vmatpush2.msra.mxu0 0.0
        %734 = vmatprep.subr.mxu0 0.0
        %735 = vmatpush2.msra.mxu0 0.0
        %736 = vmatprep.subr.mxu0 0.0
        %737 = vmatpush2.msra.mxu0 0.0
        %738 = vmatprep.subr.mxu0 0.0
        %739 = vmatpush2.msra.mxu0 0.0
        %740 = vmatprep.subr.mxu0 0.0
        %741 = vmatpush2.msra.mxu0 0.0
        %742 = vmatprep.mubr.f32.mxu0 0.0
        %743 = vmatmul.mubr.f32.gmra.mxu0 %v673
        %v744 = vpop.f32.mrf.mxu0
        %v745 = vadd.f32 0.0, %v744
        %v746 = vpop.f32.mrf.mxu0
        %747 = vdwg.mxu0
        %v748 = vld [vmem:[%s3] sm:$0xff]
        %v749 = vld [vmem:[%s3 + $0x8] sm:$0xff]
        %v750 = vld [vmem:[%s3 + $0x10] sm:$0xff]
        %v751 = vld [vmem:[%s3 + $0x18] sm:$0xff]
        %v752 = vld [vmem:[%s4] sm:$0xff]
        %v753 = vld [vmem:[%s4 + $0x8] sm:$0xff]
        %v754 = vld [vmem:[%s4 + $0x10] sm:$0xff]
        %v755 = vld [vmem:[%s4 + $0x18] sm:$0xff]
        %vm756 = vcmask 130048
        %v758 = vsel %vm756, %v745, 0
        %760 = vmatprep.subr.mxu0 0.0
        %761 = vmatpush1.msra.mxu0 0.0
        %762 = vmatprep.subr.mxu0 0.0
        %763 = vmatpush1.msra.mxu0 0.0
        %764 = vmatprep.subr.mxu0 0.0
        %765 = vmatpush1.msra.mxu0 0.0
        %766 = vmatprep.subr.mxu0 0.0
        %767 = vmatpush1.msra.mxu0 0.0
        %768 = vmatprep.subr.mxu0 0.0
        %769 = vmatpush1.msra.mxu0 0.0
        %770 = vmatprep.subr.mxu0 0.0
        %771 = vmatpush1.msra.mxu0 0.0
        %772 = vmatprep.subr.mxu0 0.0
        %773 = vmatpush1.msra.mxu0 0.0
        %774 = vmatprep.subr.mxu0 0.0
        %775 = vmatpush1.msra.mxu0 0.0
        %776 = vmatprep.subr.mxu0 0.0
        %777 = vmatpush1.msra.mxu0 0.0
        %778 = vmatprep.subr.mxu0 0.0
        %779 = vmatpush1.msra.mxu0 0.0
        %780 = vmatprep.subr.mxu0 0.0
        %781 = vmatpush1.msra.mxu0 0.0
        %782 = vmatprep.subr.mxu0 0.0
        %783 = vmatpush1.msra.mxu0 0.0
        %784 = vmatprep.subr.mxu0 0.0
        %785 = vmatpush1.msra.mxu0 0.0
        %786 = vmatprep.subr.mxu0 0.0
        %787 = vmatpush1.msra.mxu0 0.0
        %788 = vmatprep.subr.mxu0 %v755
        %789 = vmatpush1.msra.mxu0 %v754
        %790 = vmatprep.subr.mxu0 %v753
        %791 = vmatpush1.msra.mxu0 %v752
        %792 = vmatprep.subr.mxu0 0.0
        %793 = vmatpush2.msra.mxu0 0.0
        %794 = vmatprep.subr.mxu0 0.0
        %795 = vmatpush2.msra.mxu0 0.0
        %796 = vmatprep.subr.mxu0 0.0
        %797 = vmatpush2.msra.mxu0 0.0
        %798 = vmatprep.subr.mxu0 0.0
        %799 = vmatpush2.msra.mxu0 0.0
        %800 = vmatprep.subr.mxu0 0.0
        %801 = vmatpush2.msra.mxu0 0.0
        %802 = vmatprep.subr.mxu0 0.0
        %803 = vmatpush2.msra.mxu0 0.0
        %804 = vmatprep.subr.mxu0 0.0
        %805 = vmatpush2.msra.mxu0 0.0
        %806 = vmatprep.subr.mxu0 0.0
        %807 = vmatpush2.msra.mxu0 0.0
        %808 = vmatprep.subr.mxu0 0.0
        %809 = vmatpush2.msra.mxu0 0.0
        %810 = vmatprep.subr.mxu0 0.0
        %811 = vmatpush2.msra.mxu0 0.0
        %812 = vmatprep.subr.mxu0 0.0
        %813 = vmatpush2.msra.mxu0 0.0
        %814 = vmatprep.subr.mxu0 0.0
        %815 = vmatpush2.msra.mxu0 0.0
        %816 = vmatprep.subr.mxu0 0.0
        %817 = vmatpush2.msra.mxu0 0.0
        %818 = vmatprep.subr.mxu0 0.0
        %819 = vmatpush2.msra.mxu0 0.0
        %820 = vmatprep.subr.mxu0 0.0
        %821 = vmatpush2.msra.mxu0 0.0
        %822 = vmatprep.subr.mxu0 0.0
        %823 = vmatpush2.msra.mxu0 0.0
        %824 = vmatprep.mubr.f32.mxu0 0.0
        %825 = vmatmul.mubr.f32.gmra.mxu0 %v758
        %v826 = vpop.f32.mrf.mxu0
        %v827 = vadd.f32 0.0, %v826
        %v828 = vpop.f32.mrf.mxu0
        %v829 = vadd.f32 0.0, %v828
        %830 = vdwg.mxu0
        %v832 = vsel %vm756, %v656, 0
        %834 = vmatprep.subr.mxu0 0.0
        %835 = vmatpush1.msra.mxu0 0.0
        %836 = vmatprep.subr.mxu0 0.0
        %837 = vmatpush1.msra.mxu0 0.0
        %838 = vmatprep.subr.mxu0 0.0
        %839 = vmatpush1.msra.mxu0 0.0
        %840 = vmatprep.subr.mxu0 0.0
        %841 = vmatpush1.msra.mxu0 0.0
        %842 = vmatprep.subr.mxu0 0.0
        %843 = vmatpush1.msra.mxu0 0.0
        %844 = vmatprep.subr.mxu0 0.0
        %845 = vmatpush1.msra.mxu0 0.0
        %846 = vmatprep.subr.mxu0 0.0
        %847 = vmatpush1.msra.mxu0 0.0
        %848 = vmatprep.subr.mxu0 0.0
        %849 = vmatpush1.msra.mxu0 0.0
        %850 = vmatprep.subr.mxu0 0.0
        %851 = vmatpush1.msra.mxu0 0.0
        %852 = vmatprep.subr.mxu0 0.0
        %853 = vmatpush1.msra.mxu0 0.0
        %854 = vmatprep.subr.mxu0 0.0
        %855 = vmatpush1.msra.mxu0 0.0
        %856 = vmatprep.subr.mxu0 0.0
        %857 = vmatpush1.msra.mxu0 0.0
        %858 = vmatprep.subr.mxu0 0.0
        %859 = vmatpush1.msra.mxu0 0.0
        %860 = vmatprep.subr.mxu0 0.0
        %861 = vmatpush1.msra.mxu0 0.0
        %862 = vmatprep.subr.mxu0 %v751
        %863 = vmatpush1.msra.mxu0 %v750
        %864 = vmatprep.subr.mxu0 %v749
        %865 = vmatpush1.msra.mxu0 %v748
        %866 = vmatprep.subr.mxu0 0.0
        %867 = vmatpush2.msra.mxu0 0.0
        %868 = vmatprep.subr.mxu0 0.0
        %869 = vmatpush2.msra.mxu0 0.0
        %870 = vmatprep.subr.mxu0 0.0
        %871 = vmatpush2.msra.mxu0 0.0
        %872 = vmatprep.subr.mxu0 0.0
        %873 = vmatpush2.msra.mxu0 0.0
        %874 = vmatprep.subr.mxu0 0.0
        %875 = vmatpush2.msra.mxu0 0.0
        %876 = vmatprep.subr.mxu0 0.0
        %877 = vmatpush2.msra.mxu0 0.0
        %878 = vmatprep.subr.mxu0 0.0
        %879 = vmatpush2.msra.mxu0 0.0
        %880 = vmatprep.subr.mxu0 0.0
        %881 = vmatpush2.msra.mxu0 0.0
        %882 = vmatprep.subr.mxu0 0.0
        %883 = vmatpush2.msra.mxu0 0.0
        %884 = vmatprep.subr.mxu0 0.0
        %885 = vmatpush2.msra.mxu0 0.0
        %886 = vmatprep.subr.mxu0 0.0
        %887 = vmatpush2.msra.mxu0 0.0
        %888 = vmatprep.subr.mxu0 0.0
        %889 = vmatpush2.msra.mxu0 0.0
        %890 = vmatprep.subr.mxu0 0.0
        %891 = vmatpush2.msra.mxu0 0.0
        %892 = vmatprep.subr.mxu0 0.0
        %893 = vmatpush2.msra.mxu0 0.0
        %894 = vmatprep.subr.mxu0 0.0
        %895 = vmatpush2.msra.mxu0 0.0
        %896 = vmatprep.subr.mxu0 0.0
        %897 = vmatpush2.msra.mxu0 0.0
        %898 = vmatprep.mubr.f32.mxu0 0.0
        %899 = vmatmul.mubr.f32.gmra.mxu0 %v832
        %v900 = vpop.f32.mrf.mxu0
        %v901 = vadd.f32 %v827, %v900
        %v902 = vpop.f32.mrf.mxu0
        %v903 = vadd.f32 %v829, %v902
        %904 = vdwg.mxu0
        %v905 = vld [vmem:[%s7] sm:$0xf]
        %907 = vset.pattern.permute.xlu0 0
        %908 = vperm.xlu0 %907, %v905
        %v909 = vpop.permute.xlu0 %908
        %v911 = vadd.f32 %v901, %v909
        %v912 = vadd.f32 %v903, %v909
        %v913 = vmax.f32 %v911, 0.0
        %v914 = vmax.f32 %v912, 0.0
        %v915 = vld [vmem:[%s8] sm:$0xf]
        %v916 = vld [vmem:[%s9] sm:$0xf]
        %918 = vset.pattern.permute.xlu0 0
        %919 = vperm.xlu0 %918, %v916
        %v920 = vpop.permute.xlu0 %919
        %vm922 = vcmask 31744
        %v924 = vsel %vm922, %v915, 0
        %v927 = vsel %vm580, %v913, 0
        %v930 = vsel %vm580, %v914, 0
        %932 = vmatprep.subr.mxu0 0.0
        %933 = vmatpush1.msra.mxu0 0.0
        %934 = vmatprep.subr.mxu0 0.0
        %935 = vmatpush1.msra.mxu0 0.0
        %936 = vmatprep.subr.mxu0 0.0
        %937 = vmatpush1.msra.mxu0 0.0
        %938 = vmatprep.subr.mxu0 0.0
        %939 = vmatpush1.msra.mxu0 0.0
        %940 = vmatprep.subr.mxu0 0.0
        %941 = vmatpush1.msra.mxu0 0.0
        %942 = vmatprep.subr.mxu0 0.0
        %943 = vmatpush1.msra.mxu0 0.0
        %944 = vmatprep.subr.mxu0 0.0
        %945 = vmatpush1.msra.mxu0 0.0
        %946 = vmatprep.subr.mxu0 0.0
        %947 = vmatpush1.msra.mxu0 0.0
        %948 = vmatprep.subr.mxu0 0.0
        %949 = vmatpush1.msra.mxu0 0.0
        %950 = vmatprep.subr.mxu0 0.0
        %951 = vmatpush1.msra.mxu0 0.0
        %952 = vmatprep.subr.mxu0 0.0
        %953 = vmatpush1.msra.mxu0 0.0
        %954 = vmatprep.subr.mxu0 0.0
        %955 = vmatpush1.msra.mxu0 0.0
        %956 = vmatprep.subr.mxu0 0.0
        %957 = vmatpush1.msra.mxu0 0.0
        %958 = vmatprep.subr.mxu0 0.0
        %959 = vmatpush1.msra.mxu0 0.0
        %960 = vmatprep.subr.mxu0 0.0
        %961 = vmatpush1.msra.mxu0 0.0
        %962 = vmatprep.subr.mxu0 %v930
        %963 = vmatpush1.msra.mxu0 %v927
        %964 = vmatprep.subr.mxu0 0.0
        %965 = vmatpush2.msra.mxu0 0.0
        %966 = vmatprep.subr.mxu0 0.0
        %967 = vmatpush2.msra.mxu0 0.0
        %968 = vmatprep.subr.mxu0 0.0
        %969 = vmatpush2.msra.mxu0 0.0
        %970 = vmatprep.subr.mxu0 0.0
        %971 = vmatpush2.msra.mxu0 0.0
        %972 = vmatprep.subr.mxu0 0.0
        %973 = vmatpush2.msra.mxu0 0.0
        %974 = vmatprep.subr.mxu0 0.0
        %975 = vmatpush2.msra.mxu0 0.0
        %976 = vmatprep.subr.mxu0 0.0
        %977 = vmatpush2.msra.mxu0 0.0
        %978 = vmatprep.subr.mxu0 0.0
        %979 = vmatpush2.msra.mxu0 0.0
        %980 = vmatprep.subr.mxu0 0.0
        %981 = vmatpush2.msra.mxu0 0.0
        %982 = vmatprep.subr.mxu0 0.0
        %983 = vmatpush2.msra.mxu0 0.0
        %984 = vmatprep.subr.mxu0 0.0
        %985 = vmatpush2.msra.mxu0 0.0
        %986 = vmatprep.subr.mxu0 0.0
        %987 = vmatpush2.msra.mxu0 0.0
        %988 = vmatprep.subr.mxu0 0.0
        %989 = vmatpush2.msra.mxu0 0.0
        %990 = vmatprep.subr.mxu0 0.0
        %991 = vmatpush2.msra.mxu0 0.0
        %992 = vmatprep.subr.mxu0 0.0
        %993 = vmatpush2.msra.mxu0 0.0
        %994 = vmatprep.subr.mxu0 0.0
        %995 = vmatpush2.msra.mxu0 0.0
        %996 = vmatprep.mubr.f32.mxu0 0.0
        %997 = vmatmul.mubr.f32.gmra.mxu0 %v924
        %v998 = vpop.f32.mrf.mxu0
        %v999 = vadd.f32 %v920, %v998
        %v1000 = vpop.f32.mrf.mxu0
        %v1001 = vadd.f32 %v920, %v1000
        %1002 = vdwg.mxu0
        %v1003 = vxor.u32 %v999, 2147483648
        %v1004 = vxor.u32 %v1001, 2147483648
        %v1005 = vmul.f32 %v1003, 1.442695
        %v1006 = vpow.pop %v1005
        %v1007 = vmul.f32 %v1004, 1.442695
        %v1008 = vpow.pop %v1007
        %v1009 = vadd.f32 %v1006, 1.0
        %v1010 = vadd.f32 %v1008, 1.0
        %v1011 = vrcp.pop %v1009
        %v1012 = vmul.f32 1.0, %v1011
        %v1013 = vrcp.pop %v1010
        %v1014 = vmul.f32 1.0, %v1013
        %v1017 = vcombine.low %v1012, %v1014
        %1019 = vst [vmem:[%s352] sm:$0xff] %v1017
        %s1020 = sand.u32 %s247, 1
        %s1021 = scalar_lea.sflag [#allocation3], %s1020
        %s1022 = sand.u32 %s247, 1
        %s1023 = smul.addr %s1022, 8
        %s1024 = scalar_lea.vmem [#allocation2], %s1023
        // Predicated region
        $region61: #{tpu_custom_call.1} parent=59 // pred_check
          %p1025 = pneg %p257
        $region62: #{tpu_custom_call.1} parent=59 // pred_check_branch
          %1027 = sbr.rel (%p1025) target = $region64
        $region63: #{tpu_custom_call.1} parent=59 // pred_region
          %s1029 = ssub.s32 128, 128
          %1030 = vsyncadd %s1021, %s1029
          %s1031 = smul.addr %s24, 2
          %s1032 = smul.addr %s1031, 64
          %s1033 = scalar_lea.hbm %s10, %s1032
          %s1035 = sshll.u32 %s1024, 4
          %s1036 = int_to_ptr.vmem [resolvable:$true] %s1035
          %1038 = dma.vmem_to_hbm [thread:$0]  %s1036, 128, %s1033, %s1021
        $region64: #{tpu_custom_call.1} parent=59 // pred_fallthru
          _
      $region60: #{tpu_custom_call.1} parent=5 // pred_fallthru
        _
      %p1039 = scmp.le.s32.totalorder 2, %s19
      // Predicated region
      $region65: #{tpu_custom_call.1} parent=5 // pred_check
        %p1040 = pneg %p1039
      $region66: #{tpu_custom_call.1} parent=5 // pred_check_branch
        %1042 = sbr.rel (%p1040) target = $region68
      $region67: #{tpu_custom_call.1} parent=5 // pred_region
        %s1043 = ssub.s32 %s19, 2
        // Predicated region
        $region69: #{tpu_custom_call.1} parent=67 // pred_check
          %p1044 = pneg %p263
        $region70: #{tpu_custom_call.1} parent=67 // pred_check_branch
          %1046 = sbr.rel (%p1044) target = $region72
        $region71: #{tpu_custom_call.1} parent=67 // pred_region
          %s1047 = sand.u32 %s248, 1
          %s1048 = scalar_lea.sflag [#allocation3], %s1047
          %s1049 = sand.u32 %s248, 1
          %s1050 = smul.addr %s1049, 8
          %s1051 = scalar_lea.vmem [#allocation2], %s1050
          %1052 = dma.done %s1048, 128
        $region72: #{tpu_custom_call.1} parent=67 // pred_fallthru
          _
      $region68: #{tpu_custom_call.1} parent=5 // pred_fallthru
        _
    $region6: #{tpu_custom_call.1} parent=1 // loop_footer
      %s23 = sadd.s32 1, %s19
    $region7: #{tpu_custom_call.1} parent=1 // loop_footer_branch
      %18 = sbr.rel target = $region3
    $region8: #{tpu_custom_call.1} parent=1 // loop_exit
      _
    %1053 = vsyncpa [#allocation3], 1
    %s1054 = scalar_lea.sflag [#allocation3], 1
    %1055 = vsyncpa %s1054, 1

</llo_original>
